<compile_context>
chip_gen: v5e
topology: v5e:2x2
jax: 0.10.0
libtpu: 0.0.40
codegen_flags: <defaults>
</compile_context>

<pallas_src>
import functools

import jax
import jax.numpy as jnp
from jax.experimental import pallas as pl
from jax.experimental.pallas import tpu as pltpu


# --------------------------------------------------------------------------------------
# One-time parameter preparation (hoisted out of the forward; cache the result).
# --------------------------------------------------------------------------------------
def prepare_mha_params(params, num_heads, compute_dtype=jnp.bfloat16):
    """Fuse the Linear projections into nn.MultiheadAttention's in/out projections (f32)."""
    f32 = jnp.float32
    cd = compute_dtype
    E = params["wq"].shape[1]
    assert E % num_heads == 0
    hd = E // num_heads
    scale = 1.0 / (hd ** 0.5)

    w_in, b_in = params["w_in"].astype(f32), params["b_in"].astype(f32)
    wiq, wik, wiv = w_in[:, :E], w_in[:, E:2 * E], w_in[:, 2 * E:]
    biq, bik, biv = b_in[:, :E], b_in[:, E:2 * E], b_in[:, 2 * E:]

    wq, bq = params["wq"].astype(f32), params["bq"].astype(f32)
    wk, bk = params["wk"].astype(f32), params["bk"].astype(f32)
    wv, bv = params["wv"].astype(f32), params["bv"].astype(f32)
    wo, bo = params["wo"].astype(f32), params["bo"].astype(f32)

    # General path: outer Linear folded into in-proj; 1/sqrt(hd) folded into the q weights.
    wq_c = (wq @ wiq) * scale
    bq_c = (bq @ wiq + biq) * scale
    wk_c = wk @ wik
    bk_c = bk @ wik + bik
    wv_c = wv @ wiv
    bv_c = bv @ wiv + biv

    # Degenerate (S1 == 1) path: uniform softmax -> the whole block is one affine map.
    w_tot = wv_c @ wo
    b_tot = bv_c @ wo + bo

    return {
        "wq_c": wq_c.astype(cd), "bq_c": bq_c,
        "wk_c": wk_c.astype(cd), "bk_c": bk_c,
        "wv_c": wv_c.astype(cd), "bv_c": bv_c,
        "wo": wo.astype(cd), "bo": bo,
        "w_tot": w_tot.astype(cd), "b_tot": b_tot,
    }


# --------------------------------------------------------------------------------------
# Kernels
# --------------------------------------------------------------------------------------
def _mha_degenerate_kernel(x1_ref, w_ref, b_ref, o_ref):
    """S1 == 1: keys/values are broadcasts of one row -> softmax is exactly uniform ->
    output row = x1 @ (Wv@Wiv@Wo) + fused bias.  One matmul, (bm, E) rows per step."""
    x1 = x1_ref[...].astype(w_ref.dtype)
    out = jnp.dot(x1, w_ref[...], preferred_element_type=jnp.float32) + b_ref[...]
    o_ref[...] = out.astype(o_ref.dtype)


def _mha_attention_kernel(x1_ref, x2_ref, wq_ref, bq_ref, wk_ref, bk_ref,
                          wv_ref, bv_ref, wo_ref, bo_ref, o_ref, *, num_heads):
    """General path (S1 == L): fused projections over bb*L rows, head-batched attention."""
    f32 = jnp.float32
    cd = wq_ref.dtype
    bb, L, E1 = x1_ref.shape
    E2 = x2_ref.shape[2]
    E = wq_ref.shape[1]
    hd = E // num_heads

    # Fold the batch block into the row (sublane) dimension for the projection matmuls.
    x1 = x1_ref[...].reshape(bb * L, E1).astype(cd)
    x2 = x2_ref[...].reshape(bb * L, E2).astype(cd)

    # Fused projections (outer Linear + in-proj in one matmul; q scale already folded in).
    qp = jnp.dot(x2, wq_ref[...], preferred_element_type=f32) + bq_ref[...]
    kp = jnp.dot(x1, wk_ref[...], preferred_element_type=f32) + bk_ref[...]
    vp = jnp.dot(x1, wv_ref[...], preferred_element_type=f32) + bv_ref[...]

    # Head-batched attention per batch element (static unroll; bb is small by construction).
    outs = []
    for b in range(bb):
        rows = slice(b * L, (b + 1) * L)
        q_b = pltpu.einshape("lhd->hld", qp[rows].reshape(L, num_heads, hd)).astype(cd)
        k_b = pltpu.einshape("lhd->hld", kp[rows].reshape(L, num_heads, hd)).astype(cd)
        v_b = pltpu.einshape("lhd->hld", vp[rows].reshape(L, num_heads, hd)).astype(cd)

        s = jnp.einsum("hqd,hkd->hqk", q_b, k_b, preferred_element_type=f32)   # (H, L, L)
        s = s - jnp.max(s, axis=-1, keepdims=True)
        p = jnp.exp(s)
        p = p * pl.reciprocal(jnp.sum(p, axis=-1, keepdims=True), approx=True)
        o_b = jnp.einsum("hqk,hkd->hqd", p.astype(cd), v_b,
                         preferred_element_type=f32)                           # (H, L, hd)
        outs.append(pltpu.einshape("hld->lhd", o_b).reshape(L, E))
    attn = outs[0] if bb == 1 else jnp.concatenate(outs, axis=0)               # (bb*L, E)

    out = jnp.dot(attn.astype(cd), wo_ref[...], preferred_element_type=f32) + bo_ref[...]
    o_ref[...] = out.reshape(bb, L, E).astype(o_ref.dtype)


# --------------------------------------------------------------------------------------
# Forward wrapper
# --------------------------------------------------------------------------------------
@functools.partial(jax.jit, static_argnames=("num_heads",))
def mha_forward(x1, x2, prepared, num_heads):
    """x1: (B, S1, E1) with S1 in {1, L}; x2: (B, L, E2).  Returns (B, L, E) float32."""
    B, S1, E1 = x1.shape
    B2, L, E2 = x2.shape
    assert B == B2
    E = prepared["wq_c"].shape[1]
    f32 = jnp.float32

    if S1 == 1:
        # Degenerate attention: one matmul over B rows; broadcast over L is left to XLA so the
        # kernel never writes the L-times-redundant (B, L, E) slab.
        x1_2d = x1.reshape(B, E1)
        bm = 128 if (B % 128 == 0) else B       # row tile; full B at toy sizes
        full2d = lambda shape: pl.BlockSpec(shape, lambda i: (0, 0))
        out2d = pl.pallas_call(
            _mha_degenerate_kernel,
            out_shape=jax.ShapeDtypeStruct((B, E), f32),
            grid_spec=pltpu.PrefetchScalarGridSpec(
                num_scalar_prefetch=0,
                grid=(pl.cdiv(B, bm),),
                in_specs=[
                    pl.BlockSpec((bm, E1), lambda i: (i, 0)),   # x1 rows
                    full2d((E1, E)),                            # fused W_total
                    full2d((1, E)),                             # fused b_total
                ],
                out_specs=pl.BlockSpec((bm, E), lambda i: (i, 0)),
            ),
            compiler_params=pltpu.CompilerParams(dimension_semantics=("parallel",)),
        )(x1_2d, prepared["w_tot"], prepared["b_tot"])
        return jnp.broadcast_to(out2d[:, None, :], (B, L, E))

    # General path: broadcast_to is a no-op, keys/values genuinely differ per position.
    assert S1 == L, "torch.broadcast_to requires X_1's sequence length to be 1 or L"
    # Batch block: fold a few batch elements' rows into the projections for MXU fill, keep
    # >= 2 grid steps when possible (v7x has 2 TensorCores), cap the static attention unroll.
    bb = max(1, min(pl.cdiv(B, 2), max(1, 128 // L), 8))
    nb = pl.cdiv(B, bb)
    full2d = lambda shape: pl.BlockSpec(shape, lambda i: (0, 0))

    out = pl.pallas_call(
        functools.partial(_mha_attention_kernel, num_heads=num_heads),
        out_shape=jax.ShapeDtypeStruct((B, L, E), f32),
        grid_spec=pltpu.PrefetchScalarGridSpec(
            num_scalar_prefetch=0,
            grid=(nb,),
            in_specs=[
                pl.BlockSpec((bb, L, E1), lambda i: (i, 0, 0)),   # X_1 block
                pl.BlockSpec((bb, L, E2), lambda i: (i, 0, 0)),   # X_2 block
                full2d((E2, E)), full2d((1, E)),                  # fused q proj (scaled)
                full2d((E1, E)), full2d((1, E)),                  # fused k proj
                full2d((E1, E)), full2d((1, E)),                  # fused v proj
                full2d((E, E)), full2d((1, E)),                   # out proj
            ],
            out_specs=pl.BlockSpec((bb, L, E), lambda i: (i, 0, 0)),
        ),
        # "parallel" -> shards batch blocks across the 2 TensorCores on v7x; free on v5e/v6e.
        compiler_params=pltpu.CompilerParams(dimension_semantics=("parallel",)),
    )(x1, x2,
      prepared["wq_c"], prepared["bq_c"],
      prepared["wk_c"], prepared["bk_c"],
      prepared["wv_c"], prepared["bv_c"],
      prepared["wo"], prepared["bo"])
    return out


# --------------------------------------------------------------------------------------
# Pure-JAX f32 reference (replica of the PyTorch forward) for verification.
# --------------------------------------------------------------------------------------
def mha_reference(x1, x2, p, num_heads):
    E = p["wq"].shape[1]
    q = x2 @ p["wq"] + p["bq"]
    k = jnp.broadcast_to(x1 @ p["wk"] + p["bk"], q.shape)
    v = jnp.broadcast_to(x1 @ p["wv"] + p["bv"], q.shape)
    qp = q @ p["w_in"][:, :E] + p["b_in"][:, :E]
    kp = k @ p["w_in"][:, E:2 * E] + p["b_in"][:, E:2 * E]
    vp = v @ p["w_in"][:, 2 * E:] + p["b_in"][:, 2 * E:]
    B, L, _ = q.shape
    hd = E // num_heads
    qh = qp.reshape(B, L, num_heads, hd).transpose(0, 2, 1, 3)
    kh = kp.reshape(B, L, num_heads, hd).transpose(0, 2, 1, 3)
    vh = vp.reshape(B, L, num_heads, hd).transpose(0, 2, 1, 3)
    s = jnp.einsum("bhqd,bhkd->bhqk", qh, kh) / jnp.sqrt(jnp.float32(hd))
    attn = jax.nn.softmax(s, axis=-1)
    o = jnp.einsum("bhqk,bhkd->bhqd", attn, vh)
    o = o.transpose(0, 2, 1, 3).reshape(B, L, E)
    return o @ p["wo"] + p["bo"]


if __name__ == "__main__":
    # Shapes consistent with the module:
    #   X_1: (B, 1, E_1) -- broadcast source (canonical usage);  X_2: (B, L, E_2)
    B, L = 2, 8
    E_1, E_2 = 16, 24
    E = 32          # output_embedding
    H = 4           # num_heads

    key = jax.random.PRNGKey(0)
    ks = jax.random.split(key, 13)
    f32 = jnp.float32

    params = {
        "wq":   jax.random.normal(ks[0], (E_2, E), f32) * 0.1,
        "bq":   jax.random.normal(ks[1], (1, E), f32) * 0.1,
        "wk":   jax.random.normal(ks[2], (E_1, E), f32) * 0.1,
        "bk":   jax.random.normal(ks[3], (1, E), f32) * 0.1,
        "wv":   jax.random.normal(ks[4], (E_1, E), f32) * 0.1,
        "bv":   jax.random.normal(ks[5], (1, E), f32) * 0.1,
        "w_in": jax.random.normal(ks[6], (E, 3 * E), f32) * 0.1,
        "b_in": jax.random.normal(ks[7], (1, 3 * E), f32) * 0.1,
        "wo":   jax.random.normal(ks[8], (E, E), f32) * 0.1,
        "bo":   jax.random.normal(ks[9], (1, E), f32) * 0.1,
    }

    x1 = jax.random.normal(ks[10], (B, 1, E_1), f32)
    x2 = jax.random.normal(ks[11], (B, L, E_2), f32)

    # One-time weight fusion / cast (cache this across forwards in real use).
    prepared = jax.tree_util.tree_map(jax.block_until_ready, prepare_mha_params(params, H))

    # Canonical S1 == 1 fast path.
    out = jax.block_until_ready(mha_forward(x1, x2, prepared, H))
    ref = mha_reference(x1, x2, params, H)
    assert out.shape == (B, L, E), out.shape
    assert jnp.allclose(out, ref, rtol=2e-2, atol=2e-2), float(jnp.max(jnp.abs(out - ref)))

    # Also exercise the general attention kernel (S1 == L, broadcast is a no-op).
    x1_full = jax.random.normal(ks[12], (B, L, E_1), f32)
    out2 = jax.block_until_ready(mha_forward(x1_full, x2, prepared, H))
    ref2 = mha_reference(x1_full, x2, params, H)
    assert out2.shape == (B, L, E), out2.shape
    assert jnp.allclose(out2, ref2, rtol=2e-2, atol=2e-2), float(jnp.max(jnp.abs(out2 - ref2)))

    print("KERNEL_OK")
</pallas_src>

<mosaic_0001>
module attributes {stable_mosaic.version = 11 : i64} {
  func.func @_mha_degenerate_kernel(%arg0: i32, %arg1: memref<2x16xf32, #tpu.memory_space<vmem>>, %arg2: memref<16x32xbf16, #tpu.memory_space<vmem>>, %arg3: memref<1x32xf32, #tpu.memory_space<vmem>>, %arg4: memref<2x32xf32, #tpu.memory_space<vmem>>) attributes {dimension_semantics = [#tpu.dimension_semantics<parallel>], iteration_bounds = array<i64: 1>, scalar_prefetch = 0 : i64, scratch_operands = 0 : i64, tpu.core_type = #tpu.core_type<tc>, window_params = [{transform_indices = @transform_0, window_bounds = array<i64: 2, 16>}, {pipeline_mode = #tpu.pipeline_mode<synchronous>, transform_indices = @transform_1, window_bounds = array<i64: 16, 32>}, {pipeline_mode = #tpu.pipeline_mode<synchronous>, transform_indices = @transform_2, window_bounds = array<i64: 1, 32>}, {transform_indices = @transform_3, window_bounds = array<i64: 2, 32>}]} {
    %c0 = arith.constant 0 : index
    %c0_0 = arith.constant 0 : index
    %0 = vector.load %arg1[%c0, %c0_0] : memref<2x16xf32, #tpu.memory_space<vmem>>, vector<2x16xf32>
    %1 = arith.truncf %0 : vector<2x16xf32> to vector<2x16xbf16>
    %c0_1 = arith.constant 0 : index
    %c0_2 = arith.constant 0 : index
    %2 = vector.load %arg2[%c0_1, %c0_2] : memref<16x32xbf16, #tpu.memory_space<vmem>>, vector<16x32xbf16>
    %cst = arith.constant dense<0.000000e+00> : vector<2x32xf32>
    %3 = tpu.matmul %1, %2, %cst {dimension_numbers = #tpu.dot_dimension_numbers<[1], [0], [0], [1], [0, 0, 1, 1], [], []>} : vector<2x16xbf16>, vector<16x32xbf16>, vector<2x32xf32> -> vector<2x32xf32>
    %c0_3 = arith.constant 0 : index
    %c0_4 = arith.constant 0 : index
    %4 = vector.load %arg3[%c0_3, %c0_4] : memref<1x32xf32, #tpu.memory_space<vmem>>, vector<1x32xf32>
    %5 = vector.broadcast %4 : vector<1x32xf32> to vector<2x32xf32>
    %6 = arith.addf %3, %5 : vector<2x32xf32>
    %c0_5 = arith.constant 0 : index
    %c0_6 = arith.constant 0 : index
    %7 = vector.load %arg4[%c0_5, %c0_6] : memref<2x32xf32, #tpu.memory_space<vmem>>, vector<2x32xf32>
    tpu.vector_store %arg4[%c0_5, %c0_6], %6 {strides = array<i32>} : memref<2x32xf32, #tpu.memory_space<vmem>>, vector<2x32xf32>,
    return
  }
  func.func @transform_0(%arg0: i32) -> (i32, i32) {
    %c0_i32 = arith.constant 0 : i32
    %c0_i32_0 = arith.constant 0 : i32
    return %arg0, %c0_i32 : i32, i32
  }
  func.func @transform_1(%arg0: i32) -> (i32, i32) {
    %c0_i32 = arith.constant 0 : i32
    %c0_i32_0 = arith.constant 0 : i32
    %c0_i32_1 = arith.constant 0 : i32
    return %c0_i32, %c0_i32_0 : i32, i32
  }
  func.func @transform_2(%arg0: i32) -> (i32, i32) {
    %c0_i32 = arith.constant 0 : i32
    %c0_i32_0 = arith.constant 0 : i32
    %c0_i32_1 = arith.constant 0 : i32
    return %c0_i32, %c0_i32_0 : i32, i32
  }
  func.func @transform_3(%arg0: i32) -> (i32, i32) {
    %c0_i32 = arith.constant 0 : i32
    %c0_i32_0 = arith.constant 0 : i32
    return %arg0, %c0_i32 : i32, i32
  }
}

</mosaic_0001>

<llo_original>
// kernel: mha_forward.1
$region0: #{mha_forward.1}
  #allocation0 [shape = 'u32[]', space=smem, size = 0x4, offset = 0x4, fixed_abs, tag = 'smem constant byte address 0x4 - core index']
  #allocation1 [shape = 'u32[72,128]{1,0:T(1,128)}', space=vmem, size = 0x9000, scoped, tag = 'internal scratch']
  %s0 = inlined_call_operand.hbm [shape: f32[2,16], index: 0, kind: input, shape index: {}]
  %s1 = inlined_call_operand.hbm [shape: bf16[16,32], index: 1, kind: input, shape index: {}]
  %s2 = inlined_call_operand.vmem [shape: f32[1,32], index: 2, kind: input, shape index: {}]
  %s3 = inlined_call_operand.vmem [shape: f32[2,32], index: 3, kind: output, shape index: {}]
  %s4 = sld [smem:[#allocation0]]
  $region30: #{mha_forward.1} parent=0
    _
  %s6 = ssub.s32 1, %s4
  %s7 = scalar_select 0, %s6, %s4
  $region1: #{mha_forward.1} parent=0
    #allocation2 [shape = 'u8[1024]{0}', space=vmem, size = 0x400, scoped, tag = 'input window, operand 0, single buffered']
    #allocation3 [shape = 's32[1]{0}', space=sflag, size = 0x4, scoped, tag = 'scoped memory for mha_forward.1']
    #allocation4 [shape = 'u8[4096]{0}', space=vmem, size = 0x1000, scoped, tag = 'input window, operand 1, single buffered']
    #allocation5 [shape = 's32[1]{0}', space=sflag, size = 0x4, scoped, tag = 'scoped memory for mha_forward.1']
    %8 = vsyncpa [#allocation3], 0
    %9 = vsyncpa [#allocation5], 0
    // Predicated region
    $region2: #{mha_forward.1} parent=1 // pred_check
      _
    $region3: #{mha_forward.1} parent=1 // pred_check_branch
      %11 = sbr.rel (0) target = $region5
    $region4: #{mha_forward.1} parent=1 // pred_region
      %13 = vsyncadd [#allocation3], 0
      %s15 = sshll.u32 %s0, 4
      %s16 = int_to_ptr.hbm [resolvable:$true] %s15
      %s17 = sshll.u32 [#allocation2], 4
      %s18 = int_to_ptr.vmem [resolvable:$true] %s17
      %20 = dma.hbm_to_vmem [thread:$0]  %s16, 32, %s18, [#allocation3]
    $region5: #{mha_forward.1} parent=1 // pred_fallthru
      _
    // Predicated region
    $region6: #{mha_forward.1} parent=1 // pred_check
      _
    $region7: #{mha_forward.1} parent=1 // pred_check_branch
      %22 = sbr.rel (0) target = $region9
    $region8: #{mha_forward.1} parent=1 // pred_region
      %24 = vsyncadd [#allocation5], 0
      %s25 = sshll.u32 %s1, 4
      %s26 = int_to_ptr.hbm [resolvable:$true] %s25
      %s27 = sshll.u32 [#allocation4], 4
      %s28 = int_to_ptr.vmem [resolvable:$true] %s27
      %33 = dma.hbm_to_vmem [thread:$0]  %s26, 128, %s28, [#allocation5], 64, 64, 4
    $region9: #{mha_forward.1} parent=1 // pred_fallthru
      _
    // Predicated region
    $region10: #{mha_forward.1} parent=1 // pred_check
      _
    $region11: #{mha_forward.1} parent=1 // pred_check_branch
      %35 = sbr.rel (0) target = $region13
    $region12: #{mha_forward.1} parent=1 // pred_region
      _
    $region13: #{mha_forward.1} parent=1 // pred_fallthru
      _
    // Predicated region
    $region14: #{mha_forward.1} parent=1 // pred_check
      _
    $region15: #{mha_forward.1} parent=1 // pred_check_branch
      %37 = sbr.rel (0) target = $region17
    $region16: #{mha_forward.1} parent=1 // pred_region
      %39 = dma.done [#allocation3], 32
    $region17: #{mha_forward.1} parent=1 // pred_fallthru
      _
    // Predicated region
    $region18: #{mha_forward.1} parent=1 // pred_check
      _
    $region19: #{mha_forward.1} parent=1 // pred_check_branch
      %41 = sbr.rel (0) target = $region21
    $region20: #{mha_forward.1} parent=1 // pred_region
      %43 = dma.done [#allocation5], 128
    $region21: #{mha_forward.1} parent=1 // pred_fallthru
      _
    %v45 = vld [vmem:[#allocation2] sm:$0x3]
    %v46 = vpack.c.bf16 %v45, %v45
    %v47 = vld [vmem:[#allocation4] sm:$0xf]
    %v48 = vld [vmem:[#allocation4 + $0x4] sm:$0xf]
    %v49 = vld [vmem:[%s2] sm:$0x1]
    %v51 = vperm.slane %v49, 0
    %v55 = vunpack.c.l.b16 %v47
    %v56 = vunpack.c.l.b16 %v48
    %v57 = vpack.c.b16 %v56, %v55
    %vm59 = vcmask 130048
    %v61 = vsel %vm59, %v46, 0
    %63 = vmatpush.bf16.msra.mxu0 0
    %64 = vmatpush.bf16.msra.mxu0 0
    %65 = vmatpush.bf16.msra.mxu0 0
    %66 = vmatpush.bf16.msra.mxu0 0
    %67 = vmatpush.bf16.msra.mxu0 0
    %68 = vmatpush.bf16.msra.mxu0 0
    %69 = vmatpush.bf16.msra.mxu0 0
    %70 = vmatpush.bf16.msra.mxu0 %v57
    %71 = vmatmul.bf16.gmra.mxu0 %v61
    %v72 = vpop.f32.mrf.mxu0
    %v73 = vadd.f32 %v51, %v72
    %v74 = vpop.f32.mrf.mxu0
    %75 = vdwg.mxu0
    %vm76 = vcmask 254976
    %77 = vst.msk [vmem:[%s3] sm:$0x3] %vm76, %v73
    // Predicated region
    $region22: #{mha_forward.1} parent=1 // pred_check
      _
    $region23: #{mha_forward.1} parent=1 // pred_check_branch
      %79 = sbr.rel (0) target = $region25
    $region24: #{mha_forward.1} parent=1 // pred_region
      _
    $region25: #{mha_forward.1} parent=1 // pred_fallthru
      _
    // Predicated region
    $region26: #{mha_forward.1} parent=1 // pred_check
      _
    $region27: #{mha_forward.1} parent=1 // pred_check_branch
      %81 = sbr.rel (0) target = $region29
    $region28: #{mha_forward.1} parent=1 // pred_region
      _
    $region29: #{mha_forward.1} parent=1 // pred_fallthru
      _
    %82 = vsyncpa [#allocation3], 1
    %83 = vsyncpa [#allocation5], 1

</llo_original>
